<compile_context>
chip_gen: v7x
topology: tpu7x:2x2x1
jax: 0.10.0
libtpu: 0.0.40
codegen_flags: <defaults>
</compile_context>

<pallas_src>
import functools

import jax
import jax.numpy as jnp
from jax import lax
from jax.experimental import pallas as pl
from jax.experimental.pallas import tpu as pltpu

LANES = 128
CHUNK = 128                          # rows folded per fori_loop step
ROWS_SMALL = 256                     # <= this many 128-lane rows -> fused kernel
TARGET_INPUT_BYTES = 12 * 1024 * 1024  # total double-buffered input budget
VMEM_LIMIT_BYTES = 32 * 1024 * 1024    # safe on v5e/v6e (128 MiB) and v7x (64 MiB)


def _cdiv(a, b):
    return -(-a // b)


def _round_up(a, b):
    return _cdiv(a, b) * b


# ---------------------------------------------------------------------------
# Small-input path: whole problem in one shot, scalar result written to SMEM.
# ---------------------------------------------------------------------------

def _small_unweighted_kernel(x_ref, y_ref, o_ref, *, inv_n):
    d = x_ref[...].astype(jnp.float32) - y_ref[...].astype(jnp.float32)
    o_ref[0, 0] = jnp.sum(d * d) * inv_n


def _small_weighted_kernel(x_ref, y_ref, w_ref, o_ref):
    d = x_ref[...].astype(jnp.float32) - y_ref[...].astype(jnp.float32)
    w = w_ref[...].astype(jnp.float32)
    o_ref[0, 0] = jnp.sum(d * d * w) / jnp.sum(w)


# ---------------------------------------------------------------------------
# Streaming path: (TM, 128) blocks, chunked accumulation into (8,128) partials.
# ---------------------------------------------------------------------------

def _chunk(ref, c):
    start = pl.multiple_of(c * CHUNK, CHUNK)
    return ref[pl.ds(start, CHUNK), :].astype(jnp.float32)


def _fold(v):
    # (CHUNK, 128) -> (8, 128) partial sums.  The reshape is sublane-tile
    # aligned (groups of 8 sublanes), so this is pure VPU adds, no XLU.
    return jnp.sum(v.reshape(CHUNK // 8, 8, LANES), axis=0)


def _grid_unweighted_kernel(x_ref, y_ref, num_ref, *, tm, rows_total, need_mask):
    nchunks = tm // CHUNK
    block_row0 = pl.program_id(0) * tm

    def run(masked):
        def body(c, acc):
            d = _chunk(x_ref, c) - _chunk(y_ref, c)
            num = d * d
            if masked:
                rid = (lax.broadcasted_iota(jnp.int32, (CHUNK, LANES), 0)
                       + block_row0 + c * CHUNK)
                num = jnp.where(rid < rows_total, num, 0.0)
            return acc + _fold(num)

        num_ref[...] = lax.fori_loop(0, nchunks, body,
                                     jnp.zeros((8, LANES), jnp.float32))

    if need_mask:
        is_last = pl.program_id(0) == pl.num_programs(0) - 1

        @pl.when(is_last)
        def _():
            run(True)

        @pl.when(jnp.logical_not(is_last))
        def _():
            run(False)
    else:
        run(False)


def _grid_weighted_kernel(x_ref, y_ref, w_ref, num_ref, den_ref, *,
                          tm, rows_total, need_mask):
    nchunks = tm // CHUNK
    block_row0 = pl.program_id(0) * tm

    def run(masked):
        def body(c, carry):
            acc_num, acc_den = carry
            d = _chunk(x_ref, c) - _chunk(y_ref, c)
            w = _chunk(w_ref, c)
            num = d * d * w
            if masked:
                rid = (lax.broadcasted_iota(jnp.int32, (CHUNK, LANES), 0)
                       + block_row0 + c * CHUNK)
                valid = rid < rows_total
                num = jnp.where(valid, num, 0.0)
                w = jnp.where(valid, w, 0.0)
            return acc_num + _fold(num), acc_den + _fold(w)

        acc_num, acc_den = lax.fori_loop(
            0, nchunks, body,
            (jnp.zeros((8, LANES), jnp.float32),
             jnp.zeros((8, LANES), jnp.float32)))
        num_ref[...] = acc_num
        den_ref[...] = acc_den

    if need_mask:
        is_last = pl.program_id(0) == pl.num_programs(0) - 1

        @pl.when(is_last)
        def _():
            run(True)

        @pl.when(jnp.logical_not(is_last))
        def _():
            run(False)
    else:
        run(False)


# ---------------------------------------------------------------------------
# Wrapper
# ---------------------------------------------------------------------------

def _to_rows(a, rows):
    """(rows, 128) lane-dense view; copy-free when a.size == rows*128."""
    flat = a.reshape(-1)
    n_target = rows * LANES
    if flat.shape[0] != n_target:
        # Zero-pad is exact (zeros contribute 0 to numerator and denominator).
        # Note: this costs one extra HBM pass for ragged (non-128-multiple)
        # element counts; 128-aligned inputs (the common case) are copy-free.
        flat = jnp.pad(flat, (0, n_target - flat.shape[0]))
    return flat.reshape(rows, LANES)


@jax.jit
def mse_weight_loss(x, y, weight=None):
    """Pallas TPU implementation of sum((x-y)^2 * w) / sum(w), f32 scalar."""
    assert x.shape == y.shape, (x.shape, y.shape)
    if weight is not None:
        assert weight.shape == x.shape, (weight.shape, x.shape)

    n = x.size
    if n == 0:
        return jnp.float32(jnp.nan)  # 0/0, same as the PyTorch reference

    rows = _cdiv(n, LANES)
    x2 = _to_rows(x, rows)
    y2 = _to_rows(y, rows)
    w2 = None if weight is None else _to_rows(weight, rows)

    # ---- tiny inputs: fused reduce + divide, scalar SMEM output ----
    if rows <= ROWS_SMALL:
        if weight is None:
            kern = functools.partial(_small_unweighted_kernel, inv_n=1.0 / n)
            args = (x2, y2)
        else:
            kern = _small_weighted_kernel
            args = (x2, y2, w2)
        out = pl.pallas_call(
            kern,
            out_shape=jax.ShapeDtypeStruct((1, 1), jnp.float32),
            in_specs=[pl.BlockSpec(memory_space=pltpu.MemorySpace.VMEM)] * len(args),
            out_specs=pl.BlockSpec(memory_space=pltpu.MemorySpace.SMEM),
        )(*args)
        return out[0, 0]

    # ---- streaming path: dtype-aware TM from the VMEM input budget ----
    inputs = (x, y) if weight is None else (x, y, weight)
    bytes_per_row = 2 * LANES * sum(a.dtype.itemsize for a in inputs)  # x2 buffers
    tm = max(CHUNK, (TARGET_INPUT_BYTES // bytes_per_row) // CHUNK * CHUNK)
    if rows <= tm:
        # Keep at least 2 blocks so v7x's two TensorCores both get work.
        tm = max(CHUNK, _round_up(_cdiv(rows, 2), CHUNK))
    num_blocks = _cdiv(rows, tm)
    need_mask = (rows % tm) != 0

    in_blk = pl.BlockSpec((tm, LANES), lambda i: (i, 0))
    out_blk = pl.BlockSpec((8, LANES), lambda i: (i, 0))
    out_sds = jax.ShapeDtypeStruct((num_blocks * 8, LANES), jnp.float32)
    cparams = pltpu.CompilerParams(dimension_semantics=("parallel",),
                                   vmem_limit_bytes=VMEM_LIMIT_BYTES)

    if weight is None:
        kern = functools.partial(_grid_unweighted_kernel, tm=tm,
                                 rows_total=rows, need_mask=need_mask)
        num_p = pl.pallas_call(
            kern,
            out_shape=out_sds,
            grid=(num_blocks,),
            in_specs=[in_blk, in_blk],
            out_specs=out_blk,
            compiler_params=cparams,
        )(x2, y2)
        return jnp.sum(num_p) / jnp.float32(n)

    kern = functools.partial(_grid_weighted_kernel, tm=tm,
                             rows_total=rows, need_mask=need_mask)
    num_p, den_p = pl.pallas_call(
        kern,
        out_shape=(out_sds, out_sds),
        grid=(num_blocks,),
        in_specs=[in_blk, in_blk, in_blk],
        out_specs=(out_blk, out_blk),
        compiler_params=cparams,
    )(x2, y2, w2)
    return jnp.sum(num_p) / jnp.sum(den_p)


if __name__ == "__main__":
    key = jax.random.PRNGKey(0)
    kx, ky, kw = jax.random.split(key, 3)

    # Small NCHW-like shapes consistent with the module's usage (fused path).
    x = jax.random.normal(kx, (2, 4, 16, 16), dtype=jnp.float32)
    y = jax.random.normal(ky, (2, 4, 16, 16), dtype=jnp.float32)
    w = jax.random.uniform(kw, (2, 4, 16, 16), dtype=jnp.float32) + 0.1

    loss_no_w = jax.block_until_ready(mse_weight_loss(x, y))
    loss_w = jax.block_until_ready(mse_weight_loss(x, y, w))

    ref_no_w = jnp.sum((x - y) ** 2) / x.size
    ref_w = jnp.sum((x - y) ** 2 * w) / jnp.sum(w)
    assert jnp.allclose(loss_no_w, ref_no_w, rtol=1e-5, atol=1e-6), (
        loss_no_w, ref_no_w)
    assert jnp.allclose(loss_w, ref_w, rtol=1e-5, atol=1e-6), (loss_w, ref_w)

    # Ragged bf16 input (element count not a multiple of 128), fused path.
    xb = jax.random.normal(kx, (3, 5, 33, 17), dtype=jnp.bfloat16)
    yb = jax.random.normal(ky, (3, 5, 33, 17), dtype=jnp.bfloat16)
    lb = jax.block_until_ready(mse_weight_loss(xb, yb))
    refb = jnp.sum((xb.astype(jnp.float32) - yb.astype(jnp.float32)) ** 2) / xb.size
    assert jnp.allclose(lb, refb, rtol=1e-4, atol=1e-5), (lb, refb)

    # Streaming path with a masked tail block (rows = 1040 -> 2 blocks).
    xm = jax.random.normal(kx, (2, 4, 128, 130), dtype=jnp.float32)
    ym = jax.random.normal(ky, (2, 4, 128, 130), dtype=jnp.float32)
    wm = jax.random.uniform(kw, (2, 4, 128, 130), dtype=jnp.float32) + 0.1
    lm_no_w = jax.block_until_ready(mse_weight_loss(xm, ym))
    lm_w = jax.block_until_ready(mse_weight_loss(xm, ym, wm))
    refm_no_w = jnp.sum((xm - ym) ** 2) / xm.size
    refm_w = jnp.sum((xm - ym) ** 2 * wm) / jnp.sum(wm)
    assert jnp.allclose(lm_no_w, refm_no_w, rtol=1e-4, atol=1e-5), (
        lm_no_w, refm_no_w)
    assert jnp.allclose(lm_w, refm_w, rtol=1e-4, atol=1e-5), (lm_w, refm_w)

    print("KERNEL_OK")
</pallas_src>

<mosaic_0001>
module attributes {stable_mosaic.version = 11 : i64} {
  func.func @_small_unweighted_kernel(%arg0: memref<16x128xf32, #tpu.memory_space<vmem>>, %arg1: memref<16x128xf32, #tpu.memory_space<vmem>>, %arg2: memref<1x1xf32, #tpu.memory_space<smem>>) attributes {dimension_semantics = [], scalar_prefetch = 0 : i64, scratch_operands = 0 : i64, tpu.core_type = #tpu.core_type<tc>} {
    %c0 = arith.constant 0 : index
    %c0_0 = arith.constant 0 : index
    %0 = vector.load %arg0[%c0, %c0_0] : memref<16x128xf32, #tpu.memory_space<vmem>>, vector<16x128xf32>
    %c0_1 = arith.constant 0 : index
    %c0_2 = arith.constant 0 : index
    %1 = vector.load %arg1[%c0_1, %c0_2] : memref<16x128xf32, #tpu.memory_space<vmem>>, vector<16x128xf32>
    %2 = arith.subf %0, %1 : vector<16x128xf32>
    %3 = arith.mulf %2, %2 : vector<16x128xf32>
    %4 = vector.shape_cast %3 : vector<16x128xf32> to vector<1x16x128xf32>
    %cst = arith.constant dense<0.000000e+00> : vector<1xf32>
    %5 = vector.multi_reduction <add>, %4, %cst [1, 2] : vector<1x16x128xf32> to vector<1xf32>
    %6 = vector.shape_cast %5 : vector<1xf32> to vector<1x1x1xf32>
    %7 = vector.extract %6[0, 0, 0] : f32 from vector<1x1x1xf32>
    %cst_3 = arith.constant 4.8828125E-4 : f32
    %8 = arith.mulf %7, %cst_3 : f32
    %c0_4 = arith.constant 0 : index
    %c0_5 = arith.constant 0 : index
    %9 = memref.load %arg2[%c0_4, %c0_5] : memref<1x1xf32, #tpu.memory_space<smem>>
    memref.store %8, %arg2[%c0_4, %c0_5] : memref<1x1xf32, #tpu.memory_space<smem>>
    return
  }
}

</mosaic_0001>

<llo_original>
// kernel: mse_weight_loss.1
$region0: #{mse_weight_loss.1}
  #allocation0 [shape = 'u32[]', space=smem, size = 0x4, offset = 0x4, fixed_abs, tag = 'smem constant byte address 0x4 - core index']
  #allocation1 [shape = 'u32[144,128]{1,0:T(1,128)}', space=vmem, size = 0x12000, scoped, tag = 'internal scratch']
  %s0 = inlined_call_operand.vmem [shape: f32[16,128], index: 0, kind: input, shape index: {}]
  %s1 = inlined_call_operand.vmem [shape: f32[16,128], index: 1, kind: input, shape index: {}]
  %s2 = inlined_call_operand.hbm [shape: f32[1,1], index: 2, kind: output, shape index: {}]
  %s3 = sld [smem:[#allocation0]]
  $region18: #{mse_weight_loss.1} parent=0
    _
  %s5 = ssub.s32 1, %s3
  %s6 = scalar_select 0, %s5, %s3
  $region1: #{mse_weight_loss.1} parent=0
    #allocation2 [shape = 'u8[512]{0}', space=smem, size = 0x200, scoped, tag = 'output window, operand 0, single buffered']
    #allocation3 [shape = 's32[1]{0}', space=sflag, size = 0x4, scoped, tag = 'scoped memory for mse_weight_loss.1']
    %7 = vsyncpa [#allocation3], 0
    // Predicated region
    $region2: #{mse_weight_loss.1} parent=1 // pred_check
      _
    $region3: #{mse_weight_loss.1} parent=1 // pred_check_branch
      %9 = sbr.rel (0) target = $region5
    $region4: #{mse_weight_loss.1} parent=1 // pred_region
      _
    $region5: #{mse_weight_loss.1} parent=1 // pred_fallthru
      _
    // Predicated region
    $region6: #{mse_weight_loss.1} parent=1 // pred_check
      _
    $region7: #{mse_weight_loss.1} parent=1 // pred_check_branch
      %11 = sbr.rel (0) target = $region9
    $region8: #{mse_weight_loss.1} parent=1 // pred_region
      _
    $region9: #{mse_weight_loss.1} parent=1 // pred_fallthru
      _
    %v12 = vld [vmem:[%s0] sm:$0xff]
    %v13 = vld [vmem:[%s0 + $0x8] sm:$0xff]
    %v14 = vld [vmem:[%s1] sm:$0xff]
    %v15 = vld [vmem:[%s1 + $0x8] sm:$0xff]
    %v16 = vsub.f32 %v12, %v14
    %v17 = vsub.f32 %v13, %v15
    %v18 = vmul.f32 %v16, %v16
    %v19 = vmul.f32 %v17, %v17
    %v20 = vadd.f32 %v18, %v19
    %21 = vadd.xlane.f32.xlu0 %v20
    %v22 = vpop.xlane.xlu0 %21
    %v23 = vrot.slane %v22, 4
    %v24 = vadd.f32 %v22, %v23
    %v25 = vrot.slane %v24, 2
    %v26 = vadd.f32 %v24, %v25
    %v27 = vrot.slane %v26, 1
    %v28 = vadd.f32 %v26, %v27
    %s29 = vtos %v28
    %s30 = smul.f32 %s29, 0.00048828125
    %s31 = scalar_lea.smem [#allocation2], 0
    %32 = sst [smem:[%s31]] %s30
    // Predicated region
    $region10: #{mse_weight_loss.1} parent=1 // pred_check
      _
    $region11: #{mse_weight_loss.1} parent=1 // pred_check_branch
      %34 = sbr.rel (0) target = $region13
    $region12: #{mse_weight_loss.1} parent=1 // pred_region
      %s36 = ssub.s32 16, 16
      %37 = vsyncadd [#allocation3], %s36
      %40 = dma.smem_to_hbm [#allocation2], 16, %s2, [#allocation3]
    $region13: #{mse_weight_loss.1} parent=1 // pred_fallthru
      _
    // Predicated region
    $region14: #{mse_weight_loss.1} parent=1 // pred_check
      _
    $region15: #{mse_weight_loss.1} parent=1 // pred_check_branch
      %42 = sbr.rel (0) target = $region17
    $region16: #{mse_weight_loss.1} parent=1 // pred_region
      %43 = dma.done [#allocation3], 16
    $region17: #{mse_weight_loss.1} parent=1 // pred_fallthru
      _
    %44 = sfence
    %45 = vsyncpa [#allocation3], 1

</llo_original>
